<compile_context>
chip_gen: v7x
topology: tpu7x:2x2x1
jax: 0.10.0
libtpu: 0.0.40
codegen_flags: <defaults>
</compile_context>

<pallas_src>
import functools

import jax
import jax.numpy as jnp
from jax import lax
from jax.experimental import pallas as pl
from jax.experimental.pallas import tpu as pltpu


def _round_up(x, m):
    return ((x + m - 1) // m) * m


# ----------------------------------------------------------------------------
# Kernel A: streaming pooled-sum of decoder_hiddens, viewed as (R, F) rows.
#   R = L * NL,  F = B * D.
# grid = (n_split, blocks_per_core); each parallel slice c accumulates its
# row-blocks into its own (8, F) output block (resident across the arbitrary
# axis).  The 8 sublane partials are collapsed later, outside the hot loop.
# ----------------------------------------------------------------------------
def _pool_sum_kernel(dh_ref, out_ref, *, rows_total, r_block, blocks_per_core,
                     mask_rows):
    c = pl.program_id(0)
    l = pl.program_id(1)

    @pl.when(l == 0)
    def _init():
        out_ref[...] = jnp.zeros_like(out_ref)

    slab = dh_ref[...].astype(jnp.float32)                  # (r_block, F)

    if mask_rows:
        # Zero rows that are past the real array (ragged tail or the clamped
        # duplicate block a core reads when the block count doesn't split
        # evenly).  Sum is invariant to zero rows.
        g0 = (c * blocks_per_core + l) * r_block
        rows = lax.broadcasted_iota(jnp.int32, (r_block, 1), 0) + g0
        slab = jnp.where(rows < rows_total, slab, 0.0)

    # Group the r_block sublanes into vreg-aligned groups of 8 and add them:
    # pure VALU adds, no per-step cross-sublane reduce.
    f = slab.shape[1]
    out_ref[...] += jnp.sum(slab.reshape(r_block // 8, 8, f), axis=0)


# ----------------------------------------------------------------------------
# Kernel B: GRU cell + out Linear (cold epilogue, one grid step).
#   act = [x | mp | h]  @  W_gates(2D+H, 4H)  ->  [r_pre | z_pre | gi_n | gh_n]
# ----------------------------------------------------------------------------
def _gru_cell_kernel(x_ref, mp_ref, h_ref, wg_ref, bg_ref, wo_ref, bo_ref,
                     out_ref, *, hidden_size, pool_scale, compute_dtype):
    H = hidden_size
    cd = compute_dtype

    x = x_ref[...].astype(jnp.float32)                       # (B, D)
    mp = mp_ref[...] * jnp.float32(pool_scale)               # (B, D)  pooled/scaled
    h = h_ref[...].astype(jnp.float32)                       # (B, H)

    act = jnp.concatenate([x, mp, h], axis=1).astype(cd)     # (B, 2D+H)
    g = (jnp.dot(act, wg_ref[...], preferred_element_type=jnp.float32)
         + bg_ref[...])                                      # (B, 4H)

    # PyTorch GRU cell (gate order r, z, n), element-wise math in f32.
    r = jax.nn.sigmoid(g[:, :H])
    z = jax.nn.sigmoid(g[:, H:2 * H])
    n = jnp.tanh(g[:, 2 * H:3 * H] + r * g[:, 3 * H:])
    h_new = (1.0 - z) * n + z * h                            # (B, H)

    out = (jnp.dot(h_new.astype(cd), wo_ref[...],
                   preferred_element_type=jnp.float32)
           + bo_ref[...])                                    # (B, H)

    # Two static lane-slice stores of the packed [out | h_new] tile.
    out_ref[:, :H] = out.astype(out_ref.dtype)
    out_ref[:, H:] = h_new.astype(out_ref.dtype)


def prepare_params(params, compute_dtype=jnp.bfloat16):
    """One-time repack of PyTorch-layout GRU/Linear params into kernel layout.

    Builds a single fused gate weight (2D+H, 4H) whose columns are
    [r_pre | z_pre | gi_n | gh_n] so the GRU cell is one MXU dot.
    """
    H = params["w_hh"].shape[1]
    D2 = params["w_ih"].shape[1]          # = 2 * decoder_hidden_size
    D = D2 // 2

    w_ih = params["w_ih"].astype(jnp.float32)     # (3H, 2D)  rows r|z|n
    w_hh = params["w_hh"].astype(jnp.float32)     # (3H, H)
    b_ih = params["b_ih"].astype(jnp.float32)     # (3H,)
    b_hh = params["b_hh"].astype(jnp.float32)     # (3H,)

    def gate(w, g):                               # -> (in, H)
        return w[g * H:(g + 1) * H, :].T

    wi_r, wi_z, wi_n = (gate(w_ih, g) for g in range(3))     # each (2D, H)
    wh_r, wh_z, wh_n = (gate(w_hh, g) for g in range(3))     # each (H, H)

    z_top = jnp.zeros((D2, H), jnp.float32)
    z_bot = jnp.zeros((H, H), jnp.float32)
    top = jnp.concatenate([wi_r, wi_z, wi_n, z_top], axis=1)  # (2D, 4H)
    bot = jnp.concatenate([wh_r, wh_z, z_bot, wh_n], axis=1)  # (H,  4H)
    w_gates = jnp.concatenate([top, bot], axis=0).astype(compute_dtype)

    b_gates = jnp.concatenate([
        b_ih[0:H] + b_hh[0:H],          # r_pre bias
        b_ih[H:2 * H] + b_hh[H:2 * H],  # z_pre bias
        b_ih[2 * H:3 * H],              # gi_n bias (b_in)
        b_hh[2 * H:3 * H],              # gh_n bias (b_hn), multiplied by r later
    ]).reshape(1, 4 * H)

    w_o = params["w_out"].astype(jnp.float32).T.astype(compute_dtype)  # (H, H)
    b_o = params["b_out"].astype(jnp.float32).reshape(1, H)

    return dict(w_gates=w_gates, b_gates=b_gates, w_out=w_o, b_out=b_o,
                hidden_size=H, decoder_hidden_size=D,
                compute_dtype=compute_dtype)


def global_reconstructor_forward(inp, hidden, decoder_hiddens, prep,
                                 caption_max_len, *, n_split=2, r_block=None):
    """Pallas implementation of GlobalReconstructor.forward (GRU, n_layers=1, eval).

    decoder_hiddens may be float32 or bfloat16 (stream in bf16 upstream for
    ~2x bandwidth on the dominant phase); accumulation is always f32.
    """
    L, NL, B, D = decoder_hiddens.shape
    H = prep["hidden_size"]
    assert D == prep["decoder_hidden_size"]

    R = L * NL
    F = B * D
    dh2 = decoder_hiddens.reshape(R, F)            # free row-major reshape

    # ---- generation-aware slab sizing --------------------------------------
    try:
        vmem_cap = int(pltpu.get_tpu_info().vmem_capacity_bytes)
    except Exception:                               # conservative fallback
        vmem_cap = 64 * 1024 * 1024
    if r_block is None:
        slab_budget = max(vmem_cap // 8, 4 * 1024 * 1024)   # bytes per pipeline buffer
        row_bytes = F * dh2.dtype.itemsize
        r_block = max(8, (slab_budget // max(row_bytes, 1)) // 8 * 8)
        r_block = min(r_block, _round_up(R, 8))
    assert r_block % 8 == 0

    blocks_total = pl.cdiv(R, r_block)
    n_split = max(1, min(n_split, blocks_total))    # don't duplicate tiny streams
    blocks_per_core = pl.cdiv(blocks_total, n_split)
    mask_rows = (n_split * blocks_per_core * r_block) != R

    slab_bytes = r_block * F * dh2.dtype.itemsize
    out_rows = 8 * n_split
    vmem_needed = 2 * slab_bytes + 2 * out_rows * F * 4 + (2 << 20)
    vmem_limit = int(min(vmem_cap * 3 // 4, max(vmem_needed, 16 << 20)))

    pool_kernel = functools.partial(
        _pool_sum_kernel, rows_total=R, r_block=r_block,
        blocks_per_core=blocks_per_core, mask_rows=mask_rows)

    def dh_index_map(c, l):
        # Clamp so overshooting steps (uneven core split) read a valid block;
        # their rows are fully masked to zero inside the kernel.
        return (jnp.minimum(c * blocks_per_core + l, blocks_total - 1), 0)

    pooled = pl.pallas_call(
        pool_kernel,
        out_shape=jax.ShapeDtypeStruct((out_rows, F), jnp.float32),
        grid=(n_split, blocks_per_core),
        in_specs=[pl.BlockSpec((r_block, F), dh_index_map)],
        out_specs=pl.BlockSpec((8, F), lambda c, l: (c, 0)),
        compiler_params=pltpu.CompilerParams(
            dimension_semantics=("parallel", "arbitrary"),
            vmem_limit_bytes=vmem_limit),
        cost_estimate=pl.CostEstimate(
            flops=int(R * F),
            transcendentals=0,
            bytes_accessed=int(dh2.size * dh2.dtype.itemsize + out_rows * F * 4)),
    )(dh2)

    # Tiny glue (a few KB): combine per-core / per-sublane partials and regroup
    # the flat lanes back to (B, D).  Endorsed "trivial follow-up op" — the
    # lane->sublane regroup is cheaper here than as an in-kernel relayout.
    mp_sum = pooled.sum(axis=0).reshape(B, D)       # f32 pooled SUM over (L, NL)

    # mean over L, mean over NL, / seq_len, * caption_max_len  == sum * pool_scale
    pool_scale = float(caption_max_len) / float(L * L * NL)

    cell_kernel = functools.partial(
        _gru_cell_kernel, hidden_size=H, pool_scale=pool_scale,
        compute_dtype=prep["compute_dtype"])

    const = lambda i: (0, 0)
    packed = pl.pallas_call(
        cell_kernel,
        out_shape=jax.ShapeDtypeStruct((B, 2 * H), jnp.float32),
        grid=(1,),
        in_specs=[
            pl.BlockSpec((B, D), const),
            pl.BlockSpec((B, D), const),
            pl.BlockSpec((B, H), const),
            pl.BlockSpec((2 * D + H, 4 * H), const),
            pl.BlockSpec((1, 4 * H), const),
            pl.BlockSpec((H, H), const),
            pl.BlockSpec((1, H), const),
        ],
        out_specs=pl.BlockSpec((B, 2 * H), const),
        compiler_params=pltpu.CompilerParams(
            dimension_semantics=("arbitrary",)),
        cost_estimate=pl.CostEstimate(
            flops=int(2 * B * (2 * D + H) * 4 * H + 2 * B * H * H + 10 * B * H),
            transcendentals=int(3 * B * H),
            bytes_accessed=int(4 * (B * (2 * D + H) + (2 * D + H) * 4 * H
                                    + H * H + 5 * H + B * 2 * H))),
    )(inp[0], mp_sum, hidden[0],
      prep["w_gates"], prep["b_gates"], prep["w_out"], prep["b_out"])

    out = packed[:, :H]
    h_new = packed[:, H:]
    return out, h_new[None]                         # hidden back to (1, B, H)


def _reference_forward(inp, hidden, decoder_hiddens, params, caption_max_len):
    """Pure-jnp reference mirroring the PyTorch forward (eval mode, f32)."""
    L = decoder_hiddens.shape[0]
    H = params["w_hh"].shape[1]
    mp = jnp.transpose(decoder_hiddens, (2, 3, 0, 1)).mean(2).mean(2)
    mp = mp / L * caption_max_len
    x = jnp.concatenate([inp[0], mp], axis=1)
    h = hidden[0]
    gi = x @ params["w_ih"].T + params["b_ih"]
    gh = h @ params["w_hh"].T + params["b_hh"]
    r = jax.nn.sigmoid(gi[:, :H] + gh[:, :H])
    z = jax.nn.sigmoid(gi[:, H:2 * H] + gh[:, H:2 * H])
    n = jnp.tanh(gi[:, 2 * H:] + r * gh[:, 2 * H:])
    h_new = (1.0 - z) * n + z * h
    out = h_new @ params["w_out"].T + params["b_out"]
    return out, h_new[None]


if __name__ == "__main__":
    # Small, deterministic configuration (GRU, n_layers=1, eval mode).
    B = 2                  # batch
    D = 32                 # decoder_hidden_size
    H = 32                 # hidden_size
    L = 12                 # batch_specific_len (decoder_hiddens seq len)
    NL = 2                 # decoder layer dim of decoder_hiddens
    CAPTION_MAX_LEN = 10

    key = jax.random.PRNGKey(0)
    keys = jax.random.split(key, 10)
    k = 1.0 / jnp.sqrt(jnp.float32(H))

    params = {
        "w_ih": jax.random.uniform(keys[0], (3 * H, 2 * D), jnp.float32, -k, k),
        "w_hh": jax.random.uniform(keys[1], (3 * H, H), jnp.float32, -k, k),
        "b_ih": jax.random.uniform(keys[2], (3 * H,), jnp.float32, -k, k),
        "b_hh": jax.random.uniform(keys[3], (3 * H,), jnp.float32, -k, k),
        "w_out": jax.random.uniform(keys[4], (H, H), jnp.float32, -k, k),
        "b_out": jax.random.uniform(keys[5], (H,), jnp.float32, -k, k),
    }

    decoder_hiddens = jax.random.normal(keys[6], (L, NL, B, D), jnp.float32)
    inp = jax.random.normal(keys[7], (1, B, D), jnp.float32)
    hidden = jax.random.normal(keys[8], (1, B, H), jnp.float32)

    ref_out, ref_h = _reference_forward(
        inp, hidden, decoder_hiddens, params, CAPTION_MAX_LEN)

    # --- f32 path, auto slab (single block) ----------------------------------
    prep_f32 = prepare_params(params, compute_dtype=jnp.float32)
    out_a, h_a = global_reconstructor_forward(
        inp, hidden, decoder_hiddens, prep_f32, CAPTION_MAX_LEN)
    jax.block_until_ready((out_a, h_a))
    assert out_a.shape == (B, H) and h_a.shape == (1, B, H)
    assert jnp.allclose(out_a, ref_out, atol=2e-3, rtol=2e-3)
    assert jnp.allclose(h_a, ref_h, atol=2e-3, rtol=2e-3)

    # --- f32 path, forced multi-block + 2-way parallel split (exercises the
    #     ragged-tail mask and the clamped duplicate-block path) --------------
    out_b, h_b = global_reconstructor_forward(
        inp, hidden, decoder_hiddens, prep_f32, CAPTION_MAX_LEN,
        n_split=2, r_block=8)
    jax.block_until_ready((out_b, h_b))
    assert jnp.allclose(out_b, ref_out, atol=2e-3, rtol=2e-3)
    assert jnp.allclose(h_b, ref_h, atol=2e-3, rtol=2e-3)

    # --- bf16 streaming path (decoder_hiddens stored in bf16 upstream) + bf16
    #     MXU gates; accumulation and gate element-wise math stay f32 ---------
    prep_bf16 = prepare_params(params, compute_dtype=jnp.bfloat16)
    dh_bf16 = decoder_hiddens.astype(jnp.bfloat16)
    out_c, h_c = global_reconstructor_forward(
        inp, hidden, dh_bf16, prep_bf16, CAPTION_MAX_LEN,
        n_split=2, r_block=8)
    jax.block_until_ready((out_c, h_c))
    assert jnp.allclose(out_c, ref_out, atol=5e-2, rtol=5e-2)
    assert jnp.allclose(h_c, ref_h, atol=5e-2, rtol=5e-2)

    print("KERNEL_OK")
</pallas_src>

<mosaic_0001>
module attributes {stable_mosaic.version = 11 : i64} {
  func.func @_pool_sum_kernel(%arg0: i32, %arg1: i32, %arg2: memref<24x64xf32, #tpu.memory_space<vmem>>, %arg3: memref<8x64xf32, #tpu.memory_space<vmem>>) attributes {dimension_semantics = [#tpu.dimension_semantics<parallel>, #tpu.dimension_semantics<arbitrary>], iteration_bounds = array<i64: 1, 1>, scalar_prefetch = 0 : i64, scratch_operands = 0 : i64, tpu.core_type = #tpu.core_type<tc>, window_params = [{transform_indices = @transform_0, window_bounds = array<i64: 24, 64>}, {transform_indices = @transform_1, window_bounds = array<i64: 8, 64>}]} {
    %c0_i32 = arith.constant 0 : i32
    %0 = arith.cmpi eq, %arg1, %c0_i32 : i32
    %1 = arith.extui %0 : i1 to i32
    %c0_i32_0 = arith.constant 0 : i32
    %2 = arith.cmpi ne, %1, %c0_i32_0 : i32
    scf.if %2 {
      %cst_6 = arith.constant 0.000000e+00 : f32
      %9 = vector.broadcast %cst_6 : f32 to vector<8x64xf32>
      %c0_7 = arith.constant 0 : index
      %c0_8 = arith.constant 0 : index
      %10 = vector.load %arg3[%c0_7, %c0_8] : memref<8x64xf32, #tpu.memory_space<vmem>>, vector<8x64xf32>
      tpu.vector_store %arg3[%c0_7, %c0_8], %9 {strides = array<i32>} : memref<8x64xf32, #tpu.memory_space<vmem>>, vector<8x64xf32>,
    } else {
    }
    %c0 = arith.constant 0 : index
    %c0_1 = arith.constant 0 : index
    %3 = vector.load %arg2[%c0, %c0_1] : memref<24x64xf32, #tpu.memory_space<vmem>>, vector<24x64xf32>
    %c0_2 = arith.constant 0 : index
    %c0_3 = arith.constant 0 : index
    %4 = vector.load %arg3[%c0_2, %c0_3] : memref<8x64xf32, #tpu.memory_space<vmem>>, vector<8x64xf32>
    %5 = vector.shape_cast %3 : vector<24x64xf32> to vector<3x8x64xf32>
    %cst = arith.constant dense<0.000000e+00> : vector<8x64xf32>
    %6 = vector.multi_reduction <add>, %5, %cst [0] : vector<3x8x64xf32> to vector<8x64xf32>
    %7 = arith.addf %4, %6 : vector<8x64xf32>
    %c0_4 = arith.constant 0 : index
    %c0_5 = arith.constant 0 : index
    %8 = vector.load %arg3[%c0_4, %c0_5] : memref<8x64xf32, #tpu.memory_space<vmem>>, vector<8x64xf32>
    tpu.vector_store %arg3[%c0_4, %c0_5], %7 {strides = array<i32>} : memref<8x64xf32, #tpu.memory_space<vmem>>, vector<8x64xf32>,
    return
  }
  func.func @transform_0(%arg0: i32, %arg1: i32) -> (i32, i32) {
    %c1_i32 = arith.constant 1 : i32
    %0 = arith.muli %arg0, %c1_i32 : i32
    %1 = arith.addi %0, %arg1 : i32
    %c0_i32 = arith.constant 0 : i32
    %2 = arith.minsi %1, %c0_i32 : i32
    %c0_i32_0 = arith.constant 0 : i32
    %c0_i32_1 = arith.constant 0 : i32
    return %2, %c0_i32_0 : i32, i32
  }
  func.func @transform_1(%arg0: i32, %arg1: i32) -> (i32, i32) {
    %c0_i32 = arith.constant 0 : i32
    %c0_i32_0 = arith.constant 0 : i32
    return %arg0, %c0_i32 : i32, i32
  }
}

</mosaic_0001>

<llo_original>
// kernel: tpu_custom_call.1
$region0: #{tpu_custom_call.1}
  #allocation0 [shape = 'u32[]', space=smem, size = 0x4, offset = 0x4, fixed_abs, tag = 'smem constant byte address 0x4 - core index']
  #allocation1 [shape = 'u32[144,128]{1,0:T(1,128)}', space=vmem, size = 0x12000, scoped, tag = 'internal scratch']
  %s0 = inlined_call_operand.hbm [shape: f32[24,64], index: 0, kind: input, shape index: {}]
  %s1 = inlined_call_operand.hbm [shape: f32[8,64], index: 1, kind: output, shape index: {}]
  %s2 = sld [smem:[#allocation0]]
  $region22: #{tpu_custom_call.1} parent=0
    _
  %s4 = ssub.s32 1, %s2
  %s5 = scalar_select 0, %s4, %s2
  $region1: #{tpu_custom_call.1} parent=0
    #allocation2 [shape = 'u8[12288]{0}', space=vmem, size = 0x3000, scoped, tag = 'input window, operand 0, single buffered']
    #allocation3 [shape = 's32[1]{0}', space=sflag, size = 0x4, scoped, tag = 'scoped memory for tpu_custom_call.1']
    #allocation4 [shape = 's32[1]{0}', space=sflag, size = 0x4, scoped, tag = 'scoped memory for tpu_custom_call.1']
    #allocation5 [shape = 'u8[4096]{0}', space=vmem, size = 0x1000, scoped, tag = 'output window, operand 0, single buffered']
    %6 = vsyncpa [#allocation3], 0
    %7 = vsyncpa [#allocation4], 0
    // Predicated region
    $region2: #{tpu_custom_call.1} parent=1 // pred_check
      _
    $region3: #{tpu_custom_call.1} parent=1 // pred_check_branch
      %9 = sbr.rel (0) target = $region5
    $region4: #{tpu_custom_call.1} parent=1 // pred_region
      %s10 = sadd.s32 0, 0
      %p11 = scmp.lt.s32.totalorder %s10, 0
      %s12 = scalar_select %p11, %s10, 0
      %s13 = smul.u32 3, %s12
      %s15 = ssub.s32 384, 384
      %16 = vsyncadd [#allocation3], %s15
      %s17 = smul.addr %s13, 128
      %s18 = scalar_lea.hbm %s0, %s17
      %s19 = sshll.u32 [#allocation2], 4
      %s20 = int_to_ptr.vmem [resolvable:$true] %s19
      %25 = dma.hbm_to_vmem [thread:$0]  %s18, 384, %s20, [#allocation3], 128, 128, 8
    $region5: #{tpu_custom_call.1} parent=1 // pred_fallthru
      _
    // Predicated region
    $region6: #{tpu_custom_call.1} parent=1 // pred_check
      _
    $region7: #{tpu_custom_call.1} parent=1 // pred_check_branch
      %27 = sbr.rel (0) target = $region9
    $region8: #{tpu_custom_call.1} parent=1 // pred_region
      %28 = dma.done [#allocation3], 384
    $region9: #{tpu_custom_call.1} parent=1 // pred_fallthru
      _
    %s29 = sadd.s32 0, 0
    %p30 = scmp.lt.s32.totalorder %s29, 0
    %s31 = scalar_select %p30, %s29, 0
    %s32 = smul.u32 3, %s31
    %p33 = scmp.eq.s32.totalorder 0, 0
    // Predicated region
    $region10: #{tpu_custom_call.1} parent=1 // pred_check
      %p34 = pneg %p33
    $region11: #{tpu_custom_call.1} parent=1 // pred_check_branch
      %36 = sbr.rel (%p34) target = $region13
    $region12: #{tpu_custom_call.1} parent=1 // pred_region
      %vm37 = vcmask 523264
      %38 = vst.msk [vmem:[#allocation5] sm:$0xff] %vm37, 0.0
    $region13: #{tpu_custom_call.1} parent=1 // pred_fallthru
      _
    %v39 = vld [vmem:[#allocation2] sm:$0xff]
    %v40 = vld [vmem:[#allocation2 + $0x8] sm:$0xff]
    %v41 = vld [vmem:[#allocation2 + $0x10] sm:$0xff]
    %v42 = vld [vmem:[#allocation5] sm:$0xff]
    %vm43 = vcmask 523264
    %v44 = vsel %vm43, %v39, 0.0
    %v45 = vsel %vm43, %v40, 0.0
    %v46 = vadd.f32 %v44, %v45
    %v47 = vsel %vm43, %v41, 0.0
    %v48 = vadd.f32 %v46, %v47
    %v49 = vadd.f32 %v42, %v48
    %50 = vst.msk [vmem:[#allocation5] sm:$0xff] %vm43, %v49
    // Predicated region
    $region14: #{tpu_custom_call.1} parent=1 // pred_check
      _
    $region15: #{tpu_custom_call.1} parent=1 // pred_check_branch
      %52 = sbr.rel (0) target = $region17
    $region16: #{tpu_custom_call.1} parent=1 // pred_region
      %s54 = ssub.s32 128, 128
      %55 = vsyncadd [#allocation4], %s54
      %s57 = sshll.u32 [#allocation5], 4
      %s58 = int_to_ptr.vmem [resolvable:$true] %s57
      %60 = dma.vmem_to_hbm [thread:$0]  %s58, 128, %s1, [#allocation4]
    $region17: #{tpu_custom_call.1} parent=1 // pred_fallthru
      _
    // Predicated region
    $region18: #{tpu_custom_call.1} parent=1 // pred_check
      _
    $region19: #{tpu_custom_call.1} parent=1 // pred_check_branch
      %62 = sbr.rel (0) target = $region21
    $region20: #{tpu_custom_call.1} parent=1 // pred_region
      %63 = dma.done [#allocation4], 128
    $region21: #{tpu_custom_call.1} parent=1 // pred_fallthru
      _
    %64 = vsyncpa [#allocation3], 1
    %65 = vsyncpa [#allocation4], 1

</llo_original>
